<compile_context>
chip_gen: v7x
topology: tpu7x:2x2x1
jax: 0.10.0
libtpu: 0.0.40
codegen_flags: <defaults>
</compile_context>

<pallas_src>
import functools
import math

import jax
import jax.numpy as jnp
from jax.experimental import pallas as pl
from jax.experimental.pallas import tpu as pltpu

LN_EPS = 1e-8


def _attention_kernel(x_ref, mask_ref, gamma_ref, beta_ref,
                      wqkv_ref, bqkv_ref, wo_ref, bo_ref, out_ref, ctx_ref,
                      *, num_heads, head_dim, scale):
    # x_ref: [1, S, H] block -> one batch element, full sequence resident.
    x = x_ref[0].astype(jnp.float32)                        # [S, H]
    S, H = x.shape

    # ---- LayerNorm(hidden_size, eps=1e-8); statistics in f32 ----
    mean = jnp.mean(x, axis=-1, keepdims=True)
    centered = x - mean
    var = jnp.mean(centered * centered, axis=-1, keepdims=True)
    ln = centered * jax.lax.rsqrt(var + LN_EPS)
    ln = ln * gamma_ref[...] + beta_ref[...]

    # ---- Fused Q|K|V projection (bf16 MXU operands, f32 accumulation) ----
    ln_b = ln.astype(jnp.bfloat16)
    qkv = (jnp.dot(ln_b, wqkv_ref[...], preferred_element_type=jnp.float32)
           + bqkv_ref[...])                                  # [S, 3H] f32
    # Fold 1/sqrt(head_dim) into Q once (instead of scaling every [S,S] tile).
    q = (qkv[:, :H] * scale).astype(jnp.bfloat16)            # [S, H]
    k = qkv[:, H:2 * H].astype(jnp.bfloat16)                 # [S, H]
    v = qkv[:, 2 * H:].astype(jnp.bfloat16)                  # [S, H]

    # One XLU transpose; per-head sublane slices of K^T feed the MXU in its
    # native orientation (no per-head relayout / lane-masked contraction).
    kT = k.T                                                 # [H, S] bf16

    # Hoist the additive key-mask broadcast out of the head loop.
    mask_b = jnp.broadcast_to(mask_ref[0].astype(jnp.float32), (S, S))

    # ---- per-head attention; context written into a bf16 VMEM scratch ----
    # TODO(synk): for very large num_heads, use lax.fori_loop (or a grid axis
    #             over heads) to bound per-head liveness / code size.
    for h in range(num_heads):                               # static unrolled
        lo, hi = h * head_dim, (h + 1) * head_dim
        s = jnp.dot(q[:, lo:hi], kT[lo:hi, :],
                    preferred_element_type=jnp.float32)      # [S, S]
        s = s + mask_b
        m = jnp.max(s, axis=-1, keepdims=True)
        p = jnp.exp(s - m)
        p = p * pl.reciprocal(jnp.sum(p, axis=-1, keepdims=True), approx=True)
        ctx_ref[:, lo:hi] = jnp.dot(p.astype(jnp.bfloat16), v[:, lo:hi],
                                    preferred_element_type=jnp.float32
                                    ).astype(jnp.bfloat16)   # [S, dH]

    # ---- single fused output projection (K=H) + bias + residual ----
    o = jnp.dot(ctx_ref[...], wo_ref[...], preferred_element_type=jnp.float32)
    # BertSelfOutput eval path: no variational noise.
    out_ref[0] = (x + o + bo_ref[...]).astype(out_ref.dtype)


def _vmem_budget_bytes(S, H, io_itemsize):
    """Chip-aware VMEM budget.

    Counts double-buffered resident bf16 weights, streamed x/out blocks, and
    in-kernel f32 live values with 1.5x headroom, then clamps to ~85% of the
    physical VMEM reported for the current chip (falls back to 64 MiB if the
    query is unavailable)."""
    weights = 2 * (4 * H * H) * 2                    # wqkv[H,3H]+wo[H,H], bf16, 2 bufs
    params = 2 * (6 * H * 4 + S * 4)                 # gamma/beta/bqkv/bo + mask, 2 bufs
    streamed = 2 * 2 * S * H * io_itemsize           # x + out blocks, double-buffered
    live = (7 * S * H + 3 * S * S) * 4 + S * H * 2   # ln/qkv/q/k/v/kT/o + s/p/mask + ctx
    est = int(1.5 * (weights + params + streamed + live))
    try:
        phys = int(pltpu.get_tpu_info().vmem_capacity_bytes)
    except Exception:
        phys = 64 * 1024 * 1024
    cap = int(0.85 * phys)
    return min(max(est, 32 * 1024 * 1024), cap)


def bert_attention(x, attention_mask, gamma, beta,
                   wq, bq, wk, bk, wv, bv, wo, bo, *, num_heads):
    """BertAttention eval-mode forward.

    x:              [B, S, H]
    attention_mask: [B, S] additive key mask (0 = attend, -1e9 = masked)
    wq/wk/wv/wo:    [H, H] pre-transposed (kernel computes x @ W)
    """
    B, S, H = x.shape
    assert H % num_heads == 0
    head_dim = H // num_heads
    scale = 1.0 / math.sqrt(head_dim)

    # Fused QKV weight/bias; weights in bf16 (halves weight DMA/VMEM and feeds
    # the MXU at full rate). Output-projection weight also bf16-resident.
    wqkv = jnp.concatenate([wq, wk, wv], axis=1).astype(jnp.bfloat16)   # [H, 3H]
    bqkv = jnp.concatenate([bq, bk, bv], axis=0).reshape(1, 3 * H).astype(jnp.float32)
    wo_b = wo.astype(jnp.bfloat16)

    gamma2 = gamma.reshape(1, H).astype(jnp.float32)
    beta2 = beta.reshape(1, H).astype(jnp.float32)
    bo2 = bo.reshape(1, H).astype(jnp.float32)
    mask3 = attention_mask.reshape(B, 1, S).astype(jnp.float32)

    const = lambda b: (0, 0)
    kernel = functools.partial(_attention_kernel, num_heads=num_heads,
                               head_dim=head_dim, scale=scale)

    out = pl.pallas_call(
        kernel,
        out_shape=jax.ShapeDtypeStruct((B, S, H), x.dtype),
        grid=(B,),
        in_specs=[
            pl.BlockSpec((1, S, H), lambda b: (b, 0, 0)),   # x (per-batch block)
            pl.BlockSpec((1, 1, S), lambda b: (b, 0, 0)),   # additive key mask
            pl.BlockSpec((1, H), const),                    # gamma
            pl.BlockSpec((1, H), const),                    # beta
            pl.BlockSpec((H, 3 * H), const),                # wqkv (resident)
            pl.BlockSpec((1, 3 * H), const),                # bqkv
            pl.BlockSpec((H, H), const),                    # wo
            pl.BlockSpec((1, H), const),                    # bo
        ],
        out_specs=pl.BlockSpec((1, S, H), lambda b: (b, 0, 0)),
        scratch_shapes=[pltpu.VMEM((S, H), jnp.bfloat16)],  # per-head context
        compiler_params=pltpu.CompilerParams(
            # Batch elements are independent -> shard across TensorCores and
            # software-pipeline per-batch HBM traffic.
            dimension_semantics=("parallel",),
            vmem_limit_bytes=_vmem_budget_bytes(S, H, x.dtype.itemsize),
        ),
    )(x, mask3, gamma2, beta2, wqkv, bqkv, wo_b, bo2)
    return out


def _reference(x, attention_mask, gamma, beta,
               wq, bq, wk, bk, wv, bv, wo, bo, *, num_heads):
    B, S, H = x.shape
    dH = H // num_heads
    xf = x.astype(jnp.float32)
    mean = jnp.mean(xf, axis=-1, keepdims=True)
    var = jnp.mean((xf - mean) ** 2, axis=-1, keepdims=True)
    ln = (xf - mean) * jax.lax.rsqrt(var + LN_EPS) * gamma + beta
    q = (ln @ wq + bq).reshape(B, S, num_heads, dH).transpose(0, 2, 1, 3)
    k = (ln @ wk + bk).reshape(B, S, num_heads, dH).transpose(0, 2, 1, 3)
    v = (ln @ wv + bv).reshape(B, S, num_heads, dH).transpose(0, 2, 1, 3)
    s = jnp.einsum("bhqd,bhkd->bhqk", q, k) / math.sqrt(dH)
    s = s + attention_mask[:, None, None, :]
    p = jax.nn.softmax(s, axis=-1)
    ctx = jnp.einsum("bhqk,bhkd->bhqd", p, v)
    ctx = ctx.transpose(0, 2, 1, 3).reshape(B, S, H)
    return (xf + ctx @ wo + bo).astype(x.dtype)


if __name__ == "__main__":
    batch, seq, hidden, num_heads = 2, 8, 32, 4

    key = jax.random.PRNGKey(0)
    keys = jax.random.split(key, 9)
    scale_w = 1.0 / math.sqrt(hidden)

    x = jax.random.normal(keys[0], (batch, seq, hidden), dtype=jnp.float32)

    # Deterministic parameter init (nn.LayerNorm defaults; linears ~ 1/sqrt(H)).
    gamma = jnp.ones((hidden,), dtype=jnp.float32)
    beta = jnp.zeros((hidden,), dtype=jnp.float32)
    wq = scale_w * jax.random.normal(keys[1], (hidden, hidden), dtype=jnp.float32)
    wk = scale_w * jax.random.normal(keys[2], (hidden, hidden), dtype=jnp.float32)
    wv = scale_w * jax.random.normal(keys[3], (hidden, hidden), dtype=jnp.float32)
    wo = scale_w * jax.random.normal(keys[4], (hidden, hidden), dtype=jnp.float32)
    bq = 0.02 * jax.random.normal(keys[5], (hidden,), dtype=jnp.float32)
    bk = 0.02 * jax.random.normal(keys[6], (hidden,), dtype=jnp.float32)
    bv = 0.02 * jax.random.normal(keys[7], (hidden,), dtype=jnp.float32)
    bo = 0.02 * jax.random.normal(keys[8], (hidden,), dtype=jnp.float32)

    # Additive key mask: batch 0 fully visible, batch 1 masks the last 3 keys.
    attention_mask = jnp.zeros((batch, seq), dtype=jnp.float32)
    attention_mask = attention_mask.at[1, seq - 3:].set(-1e9)

    out = bert_attention(x, attention_mask, gamma, beta,
                         wq, bq, wk, bk, wv, bv, wo, bo, num_heads=num_heads)
    out = jax.block_until_ready(out)

    ref = _reference(x, attention_mask, gamma, beta,
                     wq, bq, wk, bk, wv, bv, wo, bo, num_heads=num_heads)
    assert out.shape == (batch, seq, hidden)
    # bf16 MXU operands (f32 accumulation) + approx reciprocal vs. f32 reference.
    assert jnp.allclose(out, ref, atol=5e-2, rtol=5e-2), \
        float(jnp.max(jnp.abs(out - ref)))

    print("KERNEL_OK")
</pallas_src>

<mosaic_0001>
module attributes {stable_mosaic.version = 11 : i64} {
  func.func @_attention_kernel(%arg0: i32, %arg1: memref<1x8x32xf32, #tpu.memory_space<vmem>>, %arg2: memref<1x1x8xf32, #tpu.memory_space<vmem>>, %arg3: memref<1x32xf32, #tpu.memory_space<vmem>>, %arg4: memref<1x32xf32, #tpu.memory_space<vmem>>, %arg5: memref<32x96xbf16, #tpu.memory_space<vmem>>, %arg6: memref<1x96xf32, #tpu.memory_space<vmem>>, %arg7: memref<32x32xbf16, #tpu.memory_space<vmem>>, %arg8: memref<1x32xf32, #tpu.memory_space<vmem>>, %arg9: memref<1x8x32xf32, #tpu.memory_space<vmem>>, %arg10: memref<8x32xbf16, #tpu.memory_space<vmem>>) attributes {dimension_semantics = [#tpu.dimension_semantics<parallel>], iteration_bounds = array<i64: 2>, scalar_prefetch = 0 : i64, scratch_operands = 1 : i64, tpu.core_type = #tpu.core_type<tc>, window_params = [{transform_indices = @transform_0, window_bounds = array<i64: 1, 8, 32>}, {transform_indices = @transform_1, window_bounds = array<i64: 1, 1, 8>}, {pipeline_mode = #tpu.pipeline_mode<synchronous>, transform_indices = @transform_2, window_bounds = array<i64: 1, 32>}, {pipeline_mode = #tpu.pipeline_mode<synchronous>, transform_indices = @transform_3, window_bounds = array<i64: 1, 32>}, {pipeline_mode = #tpu.pipeline_mode<synchronous>, transform_indices = @transform_4, window_bounds = array<i64: 32, 96>}, {pipeline_mode = #tpu.pipeline_mode<synchronous>, transform_indices = @transform_5, window_bounds = array<i64: 1, 96>}, {pipeline_mode = #tpu.pipeline_mode<synchronous>, transform_indices = @transform_6, window_bounds = array<i64: 32, 32>}, {pipeline_mode = #tpu.pipeline_mode<synchronous>, transform_indices = @transform_7, window_bounds = array<i64: 1, 32>}, {transform_indices = @transform_8, window_bounds = array<i64: 1, 8, 32>}]} {
    %c0 = arith.constant 0 : index
    %c0_0 = arith.constant 0 : index
    %c0_1 = arith.constant 0 : index
    %0 = vector.load %arg1[%c0, %c0_0, %c0_1] : memref<1x8x32xf32, #tpu.memory_space<vmem>>, vector<1x8x32xf32>
    %1 = vector.shape_cast %0 : vector<1x8x32xf32> to vector<8x32xf32>
    %cst = arith.constant dense<0.000000e+00> : vector<8xf32>
    %2 = vector.multi_reduction <add>, %1, %cst [1] : vector<8x32xf32> to vector<8xf32>
    %3 = vector.shape_cast %2 : vector<8xf32> to vector<8x1xf32>
    %cst_2 = arith.constant 3.200000e+01 : f32
    %4 = vector.broadcast %cst_2 : f32 to vector<8x1xf32>
    %5 = arith.divf %3, %4 : vector<8x1xf32>
    %6 = vector.broadcast %5 : vector<8x1xf32> to vector<8x32xf32>
    %7 = arith.subf %1, %6 : vector<8x32xf32>
    %8 = arith.mulf %7, %7 : vector<8x32xf32>
    %cst_3 = arith.constant dense<0.000000e+00> : vector<8xf32>
    %9 = vector.multi_reduction <add>, %8, %cst_3 [1] : vector<8x32xf32> to vector<8xf32>
    %10 = vector.shape_cast %9 : vector<8xf32> to vector<8x1xf32>
    %cst_4 = arith.constant 3.200000e+01 : f32
    %11 = vector.broadcast %cst_4 : f32 to vector<8x1xf32>
    %12 = arith.divf %10, %11 : vector<8x1xf32>
    %cst_5 = arith.constant 9.99999993E-9 : f32
    %13 = vector.broadcast %cst_5 : f32 to vector<8x1xf32>
    %14 = arith.addf %12, %13 : vector<8x1xf32>
    %15 = math.rsqrt %14 : vector<8x1xf32>
    %16 = vector.broadcast %15 : vector<8x1xf32> to vector<8x32xf32>
    %17 = arith.mulf %7, %16 : vector<8x32xf32>
    %c0_6 = arith.constant 0 : index
    %c0_7 = arith.constant 0 : index
    %18 = vector.load %arg3[%c0_6, %c0_7] : memref<1x32xf32, #tpu.memory_space<vmem>>, vector<1x32xf32>
    %19 = vector.broadcast %18 : vector<1x32xf32> to vector<8x32xf32>
    %20 = arith.mulf %17, %19 : vector<8x32xf32>
    %c0_8 = arith.constant 0 : index
    %c0_9 = arith.constant 0 : index
    %21 = vector.load %arg4[%c0_8, %c0_9] : memref<1x32xf32, #tpu.memory_space<vmem>>, vector<1x32xf32>
    %22 = vector.broadcast %21 : vector<1x32xf32> to vector<8x32xf32>
    %23 = arith.addf %20, %22 : vector<8x32xf32>
    %24 = arith.truncf %23 : vector<8x32xf32> to vector<8x32xbf16>
    %c0_10 = arith.constant 0 : index
    %c0_11 = arith.constant 0 : index
    %25 = vector.load %arg5[%c0_10, %c0_11] : memref<32x96xbf16, #tpu.memory_space<vmem>>, vector<32x96xbf16>
    %cst_12 = arith.constant dense<0.000000e+00> : vector<8x96xf32>
    %26 = tpu.matmul %24, %25, %cst_12 {dimension_numbers = #tpu.dot_dimension_numbers<[1], [0], [0], [1], [0, 0, 1, 1], [], []>} : vector<8x32xbf16>, vector<32x96xbf16>, vector<8x96xf32> -> vector<8x96xf32>
    %c0_13 = arith.constant 0 : index
    %c0_14 = arith.constant 0 : index
    %27 = vector.load %arg6[%c0_13, %c0_14] : memref<1x96xf32, #tpu.memory_space<vmem>>, vector<1x96xf32>
    %28 = vector.broadcast %27 : vector<1x96xf32> to vector<8x96xf32>
    %29 = arith.addf %26, %28 : vector<8x96xf32>
    %30 = vector.extract_strided_slice %29 {offsets = [0, 0], sizes = [8, 32], strides = [1, 1]} : vector<8x96xf32> to vector<8x32xf32>
    %cst_15 = arith.constant 0.353553385 : f32
    %31 = vector.broadcast %cst_15 : f32 to vector<8x32xf32>
    %32 = arith.mulf %30, %31 : vector<8x32xf32>
    %33 = arith.truncf %32 : vector<8x32xf32> to vector<8x32xbf16>
    %34 = vector.extract_strided_slice %29 {offsets = [0, 32], sizes = [8, 32], strides = [1, 1]} : vector<8x96xf32> to vector<8x32xf32>
    %35 = arith.truncf %34 : vector<8x32xf32> to vector<8x32xbf16>
    %36 = vector.extract_strided_slice %29 {offsets = [0, 64], sizes = [8, 32], strides = [1, 1]} : vector<8x96xf32> to vector<8x32xf32>
    %37 = arith.truncf %36 : vector<8x32xf32> to vector<8x32xbf16>
    %38 = tpu.transpose %35, [1, 0] : vector<8x32xbf16> -> vector<32x8xbf16>
    %c0_16 = arith.constant 0 : index
    %c0_17 = arith.constant 0 : index
    %c0_18 = arith.constant 0 : index
    %39 = vector.load %arg2[%c0_16, %c0_17, %c0_18] : memref<1x1x8xf32, #tpu.memory_space<vmem>>, vector<1x1x8xf32>
    %40 = vector.shape_cast %39 : vector<1x1x8xf32> to vector<1x8xf32>
    %41 = vector.shape_cast %40 : vector<1x8xf32> to vector<1x8xf32>
    %42 = vector.broadcast %41 : vector<1x8xf32> to vector<8x8xf32>
    %43 = vector.extract_strided_slice %33 {offsets = [0, 0], sizes = [8, 8], strides = [1, 1]} : vector<8x32xbf16> to vector<8x8xbf16>
    %44 = vector.extract_strided_slice %38 {offsets = [0, 0], sizes = [8, 8], strides = [1, 1]} : vector<32x8xbf16> to vector<8x8xbf16>
    %cst_19 = arith.constant dense<0.000000e+00> : vector<8x8xf32>
    %45 = tpu.matmul %43, %44, %cst_19 {dimension_numbers = #tpu.dot_dimension_numbers<[1], [0], [0], [1], [0, 0, 1, 1], [], []>} : vector<8x8xbf16>, vector<8x8xbf16>, vector<8x8xf32> -> vector<8x8xf32>
    %46 = arith.addf %45, %42 : vector<8x8xf32>
    %cst_20 = arith.constant dense<0xFF800000> : vector<8xf32>
    %47 = vector.multi_reduction <maximumf>, %46, %cst_20 [1] : vector<8x8xf32> to vector<8xf32>
    %48 = vector.shape_cast %47 : vector<8xf32> to vector<8x1xf32>
    %49 = vector.broadcast %48 : vector<8x1xf32> to vector<8x8xf32>
    %50 = arith.subf %46, %49 : vector<8x8xf32>
    %51 = math.exp %50 : vector<8x8xf32>
    %cst_21 = arith.constant dense<0.000000e+00> : vector<8xf32>
    %52 = vector.multi_reduction <add>, %51, %cst_21 [1] : vector<8x8xf32> to vector<8xf32>
    %53 = vector.shape_cast %52 : vector<8xf32> to vector<8x1xf32>
    %54 = tpu.reciprocal %53 {approx = true} : vector<8x1xf32> -> vector<8x1xf32>
    %55 = vector.broadcast %54 : vector<8x1xf32> to vector<8x8xf32>
    %56 = arith.mulf %51, %55 : vector<8x8xf32>
    %57 = arith.truncf %56 : vector<8x8xf32> to vector<8x8xbf16>
    %58 = vector.extract_strided_slice %37 {offsets = [0, 0], sizes = [8, 8], strides = [1, 1]} : vector<8x32xbf16> to vector<8x8xbf16>
    %cst_22 = arith.constant dense<0.000000e+00> : vector<8x8xf32>
    %59 = tpu.matmul %57, %58, %cst_22 {dimension_numbers = #tpu.dot_dimension_numbers<[1], [0], [0], [1], [0, 0, 1, 1], [], []>} : vector<8x8xbf16>, vector<8x8xbf16>, vector<8x8xf32> -> vector<8x8xf32>
    %60 = arith.truncf %59 : vector<8x8xf32> to vector<8x8xbf16>
    %c0_23 = arith.constant 0 : index
    %c0_24 = arith.constant 0 : index
    %61 = vector.load %arg10[%c0_23, %c0_24] : memref<8x32xbf16, #tpu.memory_space<vmem>>, vector<8x8xbf16>
    tpu.vector_store %arg10[%c0_23, %c0_24], %60 {strides = array<i32>} : memref<8x32xbf16, #tpu.memory_space<vmem>>, vector<8x8xbf16>,
    %62 = vector.extract_strided_slice %33 {offsets = [0, 8], sizes = [8, 8], strides = [1, 1]} : vector<8x32xbf16> to vector<8x8xbf16>
    %63 = vector.extract_strided_slice %38 {offsets = [8, 0], sizes = [8, 8], strides = [1, 1]} : vector<32x8xbf16> to vector<8x8xbf16>
    %cst_25 = arith.constant dense<0.000000e+00> : vector<8x8xf32>
    %64 = tpu.matmul %62, %63, %cst_25 {dimension_numbers = #tpu.dot_dimension_numbers<[1], [0], [0], [1], [0, 0, 1, 1], [], []>} : vector<8x8xbf16>, vector<8x8xbf16>, vector<8x8xf32> -> vector<8x8xf32>
    %65 = arith.addf %64, %42 : vector<8x8xf32>
    %cst_26 = arith.constant dense<0xFF800000> : vector<8xf32>
    %66 = vector.multi_reduction <maximumf>, %65, %cst_26 [1] : vector<8x8xf32> to vector<8xf32>
    %67 = vector.shape_cast %66 : vector<8xf32> to vector<8x1xf32>
    %68 = vector.broadcast %67 : vector<8x1xf32> to vector<8x8xf32>
    %69 = arith.subf %65, %68 : vector<8x8xf32>
    %70 = math.exp %69 : vector<8x8xf32>
    %cst_27 = arith.constant dense<0.000000e+00> : vector<8xf32>
    %71 = vector.multi_reduction <add>, %70, %cst_27 [1] : vector<8x8xf32> to vector<8xf32>
    %72 = vector.shape_cast %71 : vector<8xf32> to vector<8x1xf32>
    %73 = tpu.reciprocal %72 {approx = true} : vector<8x1xf32> -> vector<8x1xf32>
    %74 = vector.broadcast %73 : vector<8x1xf32> to vector<8x8xf32>
    %75 = arith.mulf %70, %74 : vector<8x8xf32>
    %76 = arith.truncf %75 : vector<8x8xf32> to vector<8x8xbf16>
    %77 = vector.extract_strided_slice %37 {offsets = [0, 8], sizes = [8, 8], strides = [1, 1]} : vector<8x32xbf16> to vector<8x8xbf16>
    %cst_28 = arith.constant dense<0.000000e+00> : vector<8x8xf32>
    %78 = tpu.matmul %76, %77, %cst_28 {dimension_numbers = #tpu.dot_dimension_numbers<[1], [0], [0], [1], [0, 0, 1, 1], [], []>} : vector<8x8xbf16>, vector<8x8xbf16>, vector<8x8xf32> -> vector<8x8xf32>
    %79 = arith.truncf %78 : vector<8x8xf32> to vector<8x8xbf16>
    %c0_29 = arith.constant 0 : index
    %c8 = arith.constant 8 : index
    %80 = vector.load %arg10[%c0_29, %c8] : memref<8x32xbf16, #tpu.memory_space<vmem>>, vector<8x8xbf16>
    tpu.vector_store %arg10[%c0_29, %c8], %79 {strides = array<i32>} : memref<8x32xbf16, #tpu.memory_space<vmem>>, vector<8x8xbf16>,
    %81 = vector.extract_strided_slice %33 {offsets = [0, 16], sizes = [8, 8], strides = [1, 1]} : vector<8x32xbf16> to vector<8x8xbf16>
    %82 = vector.extract_strided_slice %38 {offsets = [16, 0], sizes = [8, 8], strides = [1, 1]} : vector<32x8xbf16> to vector<8x8xbf16>
    %cst_30 = arith.constant dense<0.000000e+00> : vector<8x8xf32>
    %83 = tpu.matmul %81, %82, %cst_30 {dimension_numbers = #tpu.dot_dimension_numbers<[1], [0], [0], [1], [0, 0, 1, 1], [], []>} : vector<8x8xbf16>, vector<8x8xbf16>, vector<8x8xf32> -> vector<8x8xf32>
    %84 = arith.addf %83, %42 : vector<8x8xf32>
    %cst_31 = arith.constant dense<0xFF800000> : vector<8xf32>
    %85 = vector.multi_reduction <maximumf>, %84, %cst_31 [1] : vector<8x8xf32> to vector<8xf32>
    %86 = vector.shape_cast %85 : vector<8xf32> to vector<8x1xf32>
    %87 = vector.broadcast %86 : vector<8x1xf32> to vector<8x8xf32>
    %88 = arith.subf %84, %87 : vector<8x8xf32>
    %89 = math.exp %88 : vector<8x8xf32>
    %cst_32 = arith.constant dense<0.000000e+00> : vector<8xf32>
    %90 = vector.multi_reduction <add>, %89, %cst_32 [1] : vector<8x8xf32> to vector<8xf32>
    %91 = vector.shape_cast %90 : vector<8xf32> to vector<8x1xf32>
    %92 = tpu.reciprocal %91 {approx = true} : vector<8x1xf32> -> vector<8x1xf32>
    %93 = vector.broadcast %92 : vector<8x1xf32> to vector<8x8xf32>
    %94 = arith.mulf %89, %93 : vector<8x8xf32>
    %95 = arith.truncf %94 : vector<8x8xf32> to vector<8x8xbf16>
    %96 = vector.extract_strided_slice %37 {offsets = [0, 16], sizes = [8, 8], strides = [1, 1]} : vector<8x32xbf16> to vector<8x8xbf16>
    %cst_33 = arith.constant dense<0.000000e+00> : vector<8x8xf32>
    %97 = tpu.matmul %95, %96, %cst_33 {dimension_numbers = #tpu.dot_dimension_numbers<[1], [0], [0], [1], [0, 0, 1, 1], [], []>} : vector<8x8xbf16>, vector<8x8xbf16>, vector<8x8xf32> -> vector<8x8xf32>
    %98 = arith.truncf %97 : vector<8x8xf32> to vector<8x8xbf16>
    %c0_34 = arith.constant 0 : index
    %c16 = arith.constant 16 : index
    %99 = vector.load %arg10[%c0_34, %c16] : memref<8x32xbf16, #tpu.memory_space<vmem>>, vector<8x8xbf16>
    tpu.vector_store %arg10[%c0_34, %c16], %98 {strides = array<i32>} : memref<8x32xbf16, #tpu.memory_space<vmem>>, vector<8x8xbf16>,
    %100 = vector.extract_strided_slice %33 {offsets = [0, 24], sizes = [8, 8], strides = [1, 1]} : vector<8x32xbf16> to vector<8x8xbf16>
    %101 = vector.extract_strided_slice %38 {offsets = [24, 0], sizes = [8, 8], strides = [1, 1]} : vector<32x8xbf16> to vector<8x8xbf16>
    %cst_35 = arith.constant dense<0.000000e+00> : vector<8x8xf32>
    %102 = tpu.matmul %100, %101, %cst_35 {dimension_numbers = #tpu.dot_dimension_numbers<[1], [0], [0], [1], [0, 0, 1, 1], [], []>} : vector<8x8xbf16>, vector<8x8xbf16>, vector<8x8xf32> -> vector<8x8xf32>
    %103 = arith.addf %102, %42 : vector<8x8xf32>
    %cst_36 = arith.constant dense<0xFF800000> : vector<8xf32>
    %104 = vector.multi_reduction <maximumf>, %103, %cst_36 [1] : vector<8x8xf32> to vector<8xf32>
    %105 = vector.shape_cast %104 : vector<8xf32> to vector<8x1xf32>
    %106 = vector.broadcast %105 : vector<8x1xf32> to vector<8x8xf32>
    %107 = arith.subf %103, %106 : vector<8x8xf32>
    %108 = math.exp %107 : vector<8x8xf32>
    %cst_37 = arith.constant dense<0.000000e+00> : vector<8xf32>
    %109 = vector.multi_reduction <add>, %108, %cst_37 [1] : vector<8x8xf32> to vector<8xf32>
    %110 = vector.shape_cast %109 : vector<8xf32> to vector<8x1xf32>
    %111 = tpu.reciprocal %110 {approx = true} : vector<8x1xf32> -> vector<8x1xf32>
    %112 = vector.broadcast %111 : vector<8x1xf32> to vector<8x8xf32>
    %113 = arith.mulf %108, %112 : vector<8x8xf32>
    %114 = arith.truncf %113 : vector<8x8xf32> to vector<8x8xbf16>
    %115 = vector.extract_strided_slice %37 {offsets = [0, 24], sizes = [8, 8], strides = [1, 1]} : vector<8x32xbf16> to vector<8x8xbf16>
    %cst_38 = arith.constant dense<0.000000e+00> : vector<8x8xf32>
    %116 = tpu.matmul %114, %115, %cst_38 {dimension_numbers = #tpu.dot_dimension_numbers<[1], [0], [0], [1], [0, 0, 1, 1], [], []>} : vector<8x8xbf16>, vector<8x8xbf16>, vector<8x8xf32> -> vector<8x8xf32>
    %117 = arith.truncf %116 : vector<8x8xf32> to vector<8x8xbf16>
    %c0_39 = arith.constant 0 : index
    %c24 = arith.constant 24 : index
    %118 = vector.load %arg10[%c0_39, %c24] : memref<8x32xbf16, #tpu.memory_space<vmem>>, vector<8x8xbf16>
    tpu.vector_store %arg10[%c0_39, %c24], %117 {strides = array<i32>} : memref<8x32xbf16, #tpu.memory_space<vmem>>, vector<8x8xbf16>,
    %c0_40 = arith.constant 0 : index
    %c0_41 = arith.constant 0 : index
    %119 = vector.load %arg10[%c0_40, %c0_41] : memref<8x32xbf16, #tpu.memory_space<vmem>>, vector<8x32xbf16>
    %c0_42 = arith.constant 0 : index
    %c0_43 = arith.constant 0 : index
    %120 = vector.load %arg7[%c0_42, %c0_43] : memref<32x32xbf16, #tpu.memory_space<vmem>>, vector<32x32xbf16>
    %cst_44 = arith.constant dense<0.000000e+00> : vector<8x32xf32>
    %121 = tpu.matmul %119, %120, %cst_44 {dimension_numbers = #tpu.dot_dimension_numbers<[1], [0], [0], [1], [0, 0, 1, 1], [], []>} : vector<8x32xbf16>, vector<32x32xbf16>, vector<8x32xf32> -> vector<8x32xf32>
    %122 = arith.addf %1, %121 : vector<8x32xf32>
    %c0_45 = arith.constant 0 : index
    %c0_46 = arith.constant 0 : index
    %123 = vector.load %arg8[%c0_45, %c0_46] : memref<1x32xf32, #tpu.memory_space<vmem>>, vector<1x32xf32>
    %124 = vector.broadcast %123 : vector<1x32xf32> to vector<8x32xf32>
    %125 = arith.addf %122, %124 : vector<8x32xf32>
    %c0_47 = arith.constant 0 : index
    %c0_48 = arith.constant 0 : index
    %c0_49 = arith.constant 0 : index
    %126 = vector.load %arg9[%c0_47, %c0_48, %c0_49] : memref<1x8x32xf32, #tpu.memory_space<vmem>>, vector<1x8x32xf32>
    %127 = vector.shape_cast %126 : vector<1x8x32xf32> to vector<8x32xf32>
    %128 = vector.shape_cast %125 : vector<8x32xf32> to vector<1x8x32xf32>
    tpu.vector_store %arg9[%c0_47, %c0_48, %c0_49], %128 {strides = array<i32>} : memref<1x8x32xf32, #tpu.memory_space<vmem>>, vector<1x8x32xf32>,
    return
  }
  func.func @transform_0(%arg0: i32) -> (i32, i32, i32) {
    %c0_i32 = arith.constant 0 : i32
    %c0_i32_0 = arith.constant 0 : i32
    %c0_i32_1 = arith.constant 0 : i32
    return %arg0, %c0_i32, %c0_i32_0 : i32, i32, i32
  }
  func.func @transform_1(%arg0: i32) -> (i32, i32, i32) {
    %c0_i32 = arith.constant 0 : i32
    %c0_i32_0 = arith.constant 0 : i32
    %c0_i32_1 = arith.constant 0 : i32
    return %arg0, %c0_i32, %c0_i32_0 : i32, i32, i32
  }
  func.func @transform_2(%arg0: i32) -> (i32, i32) {
    %c0_i32 = arith.constant 0 : i32
    %c0_i32_0 = arith.constant 0 : i32
    %c0_i32_1 = arith.constant 0 : i32
    return %c0_i32, %c0_i32_0 : i32, i32
  }
  func.func @transform_3(%arg0: i32) -> (i32, i32) {
    %c0_i32 = arith.constant 0 : i32
    %c0_i32_0 = arith.constant 0 : i32
    %c0_i32_1 = arith.constant 0 : i32
    return %c0_i32, %c0_i32_0 : i32, i32
  }
  func.func @transform_4(%arg0: i32) -> (i32, i32) {
    %c0_i32 = arith.constant 0 : i32
    %c0_i32_0 = arith.constant 0 : i32
    %c0_i32_1 = arith.constant 0 : i32
    return %c0_i32, %c0_i32_0 : i32, i32
  }
  func.func @transform_5(%arg0: i32) -> (i32, i32) {
    %c0_i32 = arith.constant 0 : i32
    %c0_i32_0 = arith.constant 0 : i32
    %c0_i32_1 = arith.constant 0 : i32
    return %c0_i32, %c0_i32_0 : i32, i32
  }
  func.func @transform_6(%arg0: i32) -> (i32, i32) {
    %c0_i32 = arith.constant 0 : i32
    %c0_i32_0 = arith.constant 0 : i32
    %c0_i32_1 = arith.constant 0 : i32
    return %c0_i32, %c0_i32_0 : i32, i32
  }
  func.func @transform_7(%arg0: i32) -> (i32, i32) {
    %c0_i32 = arith.constant 0 : i32
    %c0_i32_0 = arith.constant 0 : i32
    %c0_i32_1 = arith.constant 0 : i32
    return %c0_i32, %c0_i32_0 : i32, i32
  }
  func.func @transform_8(%arg0: i32) -> (i32, i32, i32) {
    %c0_i32 = arith.constant 0 : i32
    %c0_i32_0 = arith.constant 0 : i32
    %c0_i32_1 = arith.constant 0 : i32
    return %arg0, %c0_i32, %c0_i32_0 : i32, i32, i32
  }
}

</mosaic_0001>

<llo_original>
// kernel: tpu_custom_call.1
$region0: #{tpu_custom_call.1}
  #allocation0 [shape = 'u32[]', space=smem, size = 0x4, offset = 0x4, fixed_abs, tag = 'smem constant byte address 0x4 - core index']
  #allocation1 [shape = 'u32[144,128]{1,0:T(1,128)}', space=vmem, size = 0x12000, scoped, tag = 'internal scratch']
  #allocation2 [shape = 'bf16[8,32]{1,0:T(8,128)(2,1)}', space=vmem, size = 0x800, scoped, tag = 'scratch operand']
  %s0 = inlined_call_operand.hbm [shape: f32[2,8,32], index: 0, kind: input, shape index: {}]
  %s1 = inlined_call_operand.vmem [shape: f32[2,1,8], index: 1, kind: input, shape index: {}]
  %s2 = inlined_call_operand.vmem [shape: f32[1,32], index: 2, kind: input, shape index: {}]
  %s3 = inlined_call_operand.vmem [shape: f32[1,32], index: 3, kind: input, shape index: {}]
  %s4 = inlined_call_operand.hbm [shape: bf16[32,96], index: 4, kind: input, shape index: {}]
  %s5 = inlined_call_operand.vmem [shape: f32[1,96], index: 5, kind: input, shape index: {}]
  %s6 = inlined_call_operand.vmem [shape: bf16[32,32], index: 6, kind: input, shape index: {}]
  %s7 = inlined_call_operand.vmem [shape: f32[1,32], index: 7, kind: input, shape index: {}]
  %s8 = inlined_call_operand.hbm [shape: f32[2,8,32], index: 8, kind: output, shape index: {}]
  %s9 = sld [smem:[#allocation0]]
  $region73: #{tpu_custom_call.1} parent=0
    _
  %s11 = ssub.s32 1, %s9
  %s12 = scalar_select 0, %s11, %s9
  $region1: #{tpu_custom_call.1} parent=0
    #allocation3 [shape = 'u8[8192]{0}', space=vmem, size = 0x2000, scoped, tag = 'input window, operand 0']
    #allocation4 [shape = 's32[2]{0}', space=sflag, size = 0x8, scoped, tag = 'scoped memory for tpu_custom_call.1']
    #allocation5 [shape = 's32[2]{0}', space=sflag, size = 0x8, scoped, tag = 'scoped memory for tpu_custom_call.1']
    #allocation6 [shape = 'u8[8192]{0}', space=vmem, size = 0x2000, scoped, tag = 'input window, operand 4, single buffered']
    #allocation7 [shape = 's32[1]{0}', space=sflag, size = 0x4, scoped, tag = 'scoped memory for tpu_custom_call.1']
    #allocation8 [shape = 'u8[8192]{0}', space=vmem, size = 0x2000, scoped, tag = 'output window, operand 0']
    %13 = vsyncpa [#allocation4], 0
    %s14 = scalar_lea.sflag [#allocation4], 1
    %15 = vsyncpa %s14, 0
    %16 = vsyncpa [#allocation7], 0
    %17 = vsyncpa [#allocation5], 0
    %s18 = scalar_lea.sflag [#allocation5], 1
    %19 = vsyncpa %s18, 0
    loop: start=0, step=1, limit=4
    $region2: #{tpu_custom_call.1} parent=1 // loop_pre_header
      _
    $region3: #{tpu_custom_call.1} parent=1 // loop_header
      %s21 = sphi 0, %s25
      %p22 = scmp.ge.s32.totalorder %s21, 4
      %s31 = sphi 0, %s33
      %s34 = sphi 0, %s31
      %s35 = sphi 0, %s34
      %s51 = sphi 0, %s35
      %s57 = sphi 0, %s59
      %s60 = sphi 0, %s57
      %s61 = sphi 0, %s60
      %s77 = sphi 0, %s61
      %s81 = sphi 0, %s81
      %s83 = sphi 0, %s81
      %s84 = sphi 0, %s83
      %s98 = sphi 0, %s84
      %s102 = sphi 0, %s102
      %s104 = sphi 0, %s102
      %s105 = sphi 0, %s104
      %s119 = sphi 0, %s105
      %s123 = sphi 0, %s123
      %s125 = sphi 0, %s123
      %s126 = sphi 0, %s125
      %s140 = sphi 0, %s126
      %s144 = sphi 0, %s144
      %s146 = sphi 0, %s144
      %s147 = sphi 0, %s146
      %s161 = sphi 0, %s147
      %s165 = sphi 0, %s165
      %s167 = sphi 0, %s165
      %s168 = sphi 0, %s167
      %s182 = sphi 0, %s168
      %s186 = sphi 0, %s186
      %s188 = sphi 0, %s186
      %s189 = sphi 0, %s188
      %s203 = sphi 0, %s189
      %s209 = sphi 0, %s211
      %s212 = sphi 0, %s209
      %s213 = sphi 0, %s212
      %s229 = sphi 0, %s213
    $region4: #{tpu_custom_call.1} parent=1 // loop_header_branch
      %24 = sbr.rel (%p22) target = $region8
    $region5: #{tpu_custom_call.1} parent=1 // loop_body
      %s26 = ssub.s32 %s21, 1
      %s27 = ssub.s32 %s21, 2
      %s28 = sadd.s32 %s21, 1
      %s29 = ssub.s32 %s21, %s28
      %p30 = scmp.eq.s32.totalorder %s29, 0
      %s32 = sadd.s32 %s31, 1
      %s33 = scalar_select %p30, %s31, %s32
      %p36 = pneg %p30
      %p37 = scmp.eq.s32.totalorder %s21, 1
      %p38 = por %p36, %p37
      %p39 = scmp.ne.s32.totalorder %s31, %s34
      %p40 = scmp.eq.s32.totalorder %s21, 0
      %p41 = por %p39, %p40
      %p42 = scmp.ne.s32.totalorder %s31, %s34
      %p43 = scmp.eq.s32.totalorder %s26, 1
      %p44 = por %p42, %p43
      %p45 = scmp.ne.s32.totalorder %s34, %s35
      %p46 = scmp.eq.s32.totalorder %s26, 0
      %p47 = por %p45, %p46
      %p48 = scmp.ne.s32.totalorder %s34, %s35
      %p49 = scmp.eq.s32.totalorder %s27, 1
      %p50 = por %p48, %p49
      %p52 = scmp.ne.s32.totalorder %s35, %s51
      %p53 = scmp.eq.s32.totalorder %s27, 0
      %p54 = por %p52, %p53
      %s55 = ssub.s32 %s21, %s28
      %p56 = scmp.eq.s32.totalorder %s55, 0
      %s58 = sadd.s32 %s57, 1
      %s59 = scalar_select %p56, %s57, %s58
      %p62 = pneg %p56
      %p63 = scmp.eq.s32.totalorder %s21, 1
      %p64 = por %p62, %p63
      %p65 = scmp.ne.s32.totalorder %s57, %s60
      %p66 = scmp.eq.s32.totalorder %s21, 0
      %p67 = por %p65, %p66
      %p68 = scmp.ne.s32.totalorder %s57, %s60
      %p69 = scmp.eq.s32.totalorder %s26, 1
      %p70 = por %p68, %p69
      %p71 = scmp.ne.s32.totalorder %s60, %s61
      %p72 = scmp.eq.s32.totalorder %s26, 0
      %p73 = por %p71, %p72
      %p74 = scmp.ne.s32.totalorder %s60, %s61
      %p75 = scmp.eq.s32.totalorder %s27, 1
      %p76 = por %p74, %p75
      %p78 = scmp.ne.s32.totalorder %s61, %s77
      %p79 = scmp.eq.s32.totalorder %s27, 0
      %p80 = por %p78, %p79
      %s82 = sadd.s32 %s81, 1
      %p85 = scmp.eq.s32.totalorder %s21, 1
      %p86 = scmp.ne.s32.totalorder %s81, %s83
      %p87 = scmp.eq.s32.totalorder %s21, 0
      %p88 = por %p86, %p87
      %p89 = scmp.ne.s32.totalorder %s81, %s83
      %p90 = scmp.eq.s32.totalorder %s26, 1
      %p91 = por %p89, %p90
      %p92 = scmp.ne.s32.totalorder %s83, %s84
      %p93 = scmp.eq.s32.totalorder %s26, 0
      %p94 = por %p92, %p93
      %p95 = scmp.ne.s32.totalorder %s83, %s84
      %p96 = scmp.eq.s32.totalorder %s27, 1
      %p97 = por %p95, %p96
      %p99 = scmp.ne.s32.totalorder %s84, %s98
      %p100 = scmp.eq.s32.totalorder %s27, 0
      %p101 = por %p99, %p100
      %s103 = sadd.s32 %s102, 1
      %p106 = scmp.eq.s32.totalorder %s21, 1
      %p107 = scmp.ne.s32.totalorder %s102, %s104
      %p108 = scmp.eq.s32.totalorder %s21, 0
      %p109 = por %p107, %p108
      %p110 = scmp.ne.s32.totalorder %s102, %s104
      %p111 = scmp.eq.s32.totalorder %s26, 1
      %p112 = por %p110, %p111
      %p113 = scmp.ne.s32.totalorder %s104, %s105
      %p114 = scmp.eq.s32.totalorder %s26, 0
      %p115 = por %p113, %p114
      %p116 = scmp.ne.s32.totalorder %s104, %s105
      %p117 = scmp.eq.s32.totalorder %s27, 1
      %p118 = por %p116, %p117
      %p120 = scmp.ne.s32.totalorder %s105, %s119
      %p121 = scmp.eq.s32.totalorder %s27, 0
      %p122 = por %p120, %p121
      %s124 = sadd.s32 %s123, 1
      %p127 = scmp.eq.s32.totalorder %s21, 1
      %p128 = scmp.ne.s32.totalorder %s123, %s125
      %p129 = scmp.eq.s32.totalorder %s21, 0
      %p130 = por %p128, %p129
      %p131 = scmp.ne.s32.totalorder %s123, %s125
      %p132 = scmp.eq.s32.totalorder %s26, 1
      %p133 = por %p131, %p132
      %p134 = scmp.ne.s32.totalorder %s125, %s126
      %p135 = scmp.eq.s32.totalorder %s26, 0
      %p136 = por %p134, %p135
      %p137 = scmp.ne.s32.totalorder %s125, %s126
      %p138 = scmp.eq.s32.totalorder %s27, 1
      %p139 = por %p137, %p138
      %p141 = scmp.ne.s32.totalorder %s126, %s140
      %p142 = scmp.eq.s32.totalorder %s27, 0
      %p143 = por %p141, %p142
      %s145 = sadd.s32 %s144, 1
      %p148 = scmp.eq.s32.totalorder %s21, 1
      %p149 = scmp.ne.s32.totalorder %s144, %s146
      %p150 = scmp.eq.s32.totalorder %s21, 0
      %p151 = por %p149, %p150
      %p152 = scmp.ne.s32.totalorder %s144, %s146
      %p153 = scmp.eq.s32.totalorder %s26, 1
      %p154 = por %p152, %p153
      %p155 = scmp.ne.s32.totalorder %s146, %s147
      %p156 = scmp.eq.s32.totalorder %s26, 0
      %p157 = por %p155, %p156
      %p158 = scmp.ne.s32.totalorder %s146, %s147
      %p159 = scmp.eq.s32.totalorder %s27, 1
      %p160 = por %p158, %p159
      %p162 = scmp.ne.s32.totalorder %s147, %s161
      %p163 = scmp.eq.s32.totalorder %s27, 0
      %p164 = por %p162, %p163
      %s166 = sadd.s32 %s165, 1
      %p169 = scmp.eq.s32.totalorder %s21, 1
      %p170 = scmp.ne.s32.totalorder %s165, %s167
      %p171 = scmp.eq.s32.totalorder %s21, 0
      %p172 = por %p170, %p171
      %p173 = scmp.ne.s32.totalorder %s165, %s167
      %p174 = scmp.eq.s32.totalorder %s26, 1
      %p175 = por %p173, %p174
      %p176 = scmp.ne.s32.totalorder %s167, %s168
      %p177 = scmp.eq.s32.totalorder %s26, 0
      %p178 = por %p176, %p177
      %p179 = scmp.ne.s32.totalorder %s167, %s168
      %p180 = scmp.eq.s32.totalorder %s27, 1
      %p181 = por %p179, %p180
      %p183 = scmp.ne.s32.totalorder %s168, %s182
      %p184 = scmp.eq.s32.totalorder %s27, 0
      %p185 = por %p183, %p184
      %s187 = sadd.s32 %s186, 1
      %p190 = scmp.eq.s32.totalorder %s21, 1
      %p191 = scmp.ne.s32.totalorder %s186, %s188
      %p192 = scmp.eq.s32.totalorder %s21, 0
      %p193 = por %p191, %p192
      %p194 = scmp.ne.s32.totalorder %s186, %s188
      %p195 = scmp.eq.s32.totalorder %s26, 1
      %p196 = por %p194, %p195
      %p197 = scmp.ne.s32.totalorder %s188, %s189
      %p198 = scmp.eq.s32.totalorder %s26, 0
      %p199 = por %p197, %p198
      %p200 = scmp.ne.s32.totalorder %s188, %s189
      %p201 = scmp.eq.s32.totalorder %s27, 1
      %p202 = por %p200, %p201
      %p204 = scmp.ne.s32.totalorder %s189, %s203
      %p205 = scmp.eq.s32.totalorder %s27, 0
      %p206 = por %p204, %p205
      %s207 = ssub.s32 %s21, %s28
      %p208 = scmp.eq.s32.totalorder %s207, 0
      %s210 = sadd.s32 %s209, 1
      %s211 = scalar_select %p208, %s209, %s210
      %p214 = pneg %p208
      %p215 = scmp.eq.s32.totalorder %s21, 1
      %p216 = por %p214, %p215
      %p217 = scmp.ne.s32.totalorder %s209, %s212
      %p218 = scmp.eq.s32.totalorder %s21, 0
      %p219 = por %p217, %p218
      %p220 = scmp.ne.s32.totalorder %s209, %s212
      %p221 = scmp.eq.s32.totalorder %s26, 1
      %p222 = por %p220, %p221
      %p223 = scmp.ne.s32.totalorder %s212, %s213
      %p224 = scmp.eq.s32.totalorder %s26, 0
      %p225 = por %p223, %p224
      %p226 = scmp.ne.s32.totalorder %s212, %s213
      %p227 = scmp.eq.s32.totalorder %s27, 1
      %p228 = por %p226, %p227
      %p230 = scmp.ne.s32.totalorder %s213, %s229
      %p231 = scmp.eq.s32.totalorder %s27, 0
      %p232 = por %p230, %p231
      %p233 = scmp.le.s32.totalorder 1, %s21
      %p234 = scmp.lt.s32.totalorder %s21, 3
      %p235 = pnand %p233, %p234
      %p236 = pneg %p235
      // Predicated region
      $region9: #{tpu_custom_call.1} parent=5 // pred_check
        _
      $region10: #{tpu_custom_call.1} parent=5 // pred_check_branch
        %238 = sbr.rel (%p235) target = $region12
      $region11: #{tpu_custom_call.1} parent=5 // pred_region
        %s239 = ssub.s32 %s21, 1
        // Predicated region
        $region13: #{tpu_custom_call.1} parent=11 // pred_check
          %p240 = pneg %p94
        $region14: #{tpu_custom_call.1} parent=11 // pred_check_branch
          %242 = sbr.rel (%p240) target = $region16
        $region15: #{tpu_custom_call.1} parent=11 // pred_region
          _
        $region16: #{tpu_custom_call.1} parent=11 // pred_fallthru
          _
        // Predicated region
        $region17: #{tpu_custom_call.1} parent=11 // pred_check
          %p243 = pneg %p115
        $region18: #{tpu_custom_call.1} parent=11 // pred_check_branch
          %245 = sbr.rel (%p243) target = $region20
        $region19: #{tpu_custom_call.1} parent=11 // pred_region
          _
        $region20: #{tpu_custom_call.1} parent=11 // pred_fallthru
          _
        // Predicated region
        $region21: #{tpu_custom_call.1} parent=11 // pred_check
          %p246 = pneg %p136
        $region22: #{tpu_custom_call.1} parent=11 // pred_check_branch
          %248 = sbr.rel (%p246) target = $region24
        $region23: #{tpu_custom_call.1} parent=11 // pred_region
          %s250 = ssub.s32 256, 256
          %251 = vsyncadd [#allocation7], %s250
          %s252 = sshll.u32 [#allocation6], 4
          %s253 = int_to_ptr.vmem [resolvable:$true] %s252
          %258 = dma.hbm_to_vmem [thread:$0]  %s4, 256, %s253, [#allocation7], 64, 64, 4
        $region24: #{tpu_custom_call.1} parent=11 // pred_fallthru
          _
        // Predicated region
        $region25: #{tpu_custom_call.1} parent=11 // pred_check
          %p259 = pneg %p157
        $region26: #{tpu_custom_call.1} parent=11 // pred_check_branch
          %261 = sbr.rel (%p259) target = $region28
        $region27: #{tpu_custom_call.1} parent=11 // pred_region
          _
        $region28: #{tpu_custom_call.1} parent=11 // pred_fallthru
          _
        // Predicated region
        $region29: #{tpu_custom_call.1} parent=11 // pred_check
          %p262 = pneg %p178
        $region30: #{tpu_custom_call.1} parent=11 // pred_check_branch
          %264 = sbr.rel (%p262) target = $region32
        $region31: #{tpu_custom_call.1} parent=11 // pred_region
          _
        $region32: #{tpu_custom_call.1} parent=11 // pred_fallthru
          _
        // Predicated region
        $region33: #{tpu_custom_call.1} parent=11 // pred_check
          %p265 = pneg %p199
        $region34: #{tpu_custom_call.1} parent=11 // pred_check_branch
          %267 = sbr.rel (%p265) target = $region36
        $region35: #{tpu_custom_call.1} parent=11 // pred_region
          _
        $region36: #{tpu_custom_call.1} parent=11 // pred_fallthru
          _
      $region12: #{tpu_custom_call.1} parent=5 // pred_fallthru
        _
      %p268 = scmp.lt.s32.totalorder %s21, 2
      // Predicated region
      $region37: #{tpu_custom_call.1} parent=5 // pred_check
        %p269 = pneg %p268
      $region38: #{tpu_custom_call.1} parent=5 // pred_check_branch
        %271 = sbr.rel (%p269) target = $region40
      $region39: #{tpu_custom_call.1} parent=5 // pred_region
        // Predicated region
        $region41: #{tpu_custom_call.1} parent=39 // pred_check
          %p272 = pneg %p41
        $region42: #{tpu_custom_call.1} parent=39 // pred_check_branch
          %274 = sbr.rel (%p272) target = $region44
        $region43: #{tpu_custom_call.1} parent=39 // pred_region
          %s275 = sand.u32 %s31, 1
          %s276 = scalar_lea.sflag [#allocation4], %s275
          %s277 = sand.u32 %s31, 1
          %s278 = smul.addr %s277, 8
          %s279 = scalar_lea.vmem [#allocation3], %s278
          %s281 = ssub.s32 128, 128
          %282 = vsyncadd %s276, %s281
          %s283 = smul.addr %s21, 128
          %s284 = scalar_lea.hbm %s0, %s283
          %s286 = sshll.u32 %s279, 4
          %s287 = int_to_ptr.vmem [resolvable:$true] %s286
          %289 = dma.hbm_to_vmem [thread:$0]  %s284, 128, %s287, %s276
        $region44: #{tpu_custom_call.1} parent=39 // pred_fallthru
          _
        // Predicated region
        $region45: #{tpu_custom_call.1} parent=39 // pred_check
          %p290 = pneg %p67
        $region46: #{tpu_custom_call.1} parent=39 // pred_check_branch
          %292 = sbr.rel (%p290) target = $region48
        $region47: #{tpu_custom_call.1} parent=39 // pred_region
          %p293 = scmp.lt.s32.totalorder %s21, 1
          %s294 = scalar_select %p293, %s21, 1
          %s295 = scalar_lea.vmem %s1, %s294
        $region48: #{tpu_custom_call.1} parent=39 // pred_fallthru
          _
      $region40: #{tpu_custom_call.1} parent=5 // pred_fallthru
        _
      %p296 = scmp.le.s32.totalorder 1, %s21
      %p297 = scmp.lt.s32.totalorder %s21, 3
      %p298 = pnand %p296, %p297
      %p299 = pneg %p298
      // Predicated region
      $region49: #{tpu_custom_call.1} parent=5 // pred_check
        _
      $region50: #{tpu_custom_call.1} parent=5 // pred_check_branch
        %301 = sbr.rel (%p298) target = $region52
      $region51: #{tpu_custom_call.1} parent=5 // pred_region
        %s302 = ssub.s32 %s21, 1
        %s303 = sand.u32 %s34, 1
        %s304 = scalar_lea.sflag [#allocation4], %s303
        %s305 = sand.u32 %s34, 1
        %s306 = smul.addr %s305, 8
        %s307 = scalar_lea.vmem [#allocation3], %s306
        // Predicated region
        $region53: #{tpu_custom_call.1} parent=51 // pred_check
          %p308 = pneg %p47
        $region54: #{tpu_custom_call.1} parent=51 // pred_check_branch
          %310 = sbr.rel (%p308) target = $region56
        $region55: #{tpu_custom_call.1} parent=51 // pred_region
          %311 = dma.done %s304, 128
        $region56: #{tpu_custom_call.1} parent=51 // pred_fallthru
          _
        // Predicated region
        $region57: #{tpu_custom_call.1} parent=51 // pred_check
          %p312 = pneg %p136
        $region58: #{tpu_custom_call.1} parent=51 // pred_check_branch
          %314 = sbr.rel (%p312) target = $region60
        $region59: #{tpu_custom_call.1} parent=51 // pred_region
          %315 = dma.done [#allocation7], 256
        $region60: #{tpu_custom_call.1} parent=51 // pred_fallthru
          _
        %s316 = sand.u32 %s34, 1
        %s317 = scalar_lea.sflag [#allocation4], %s316
        %s318 = sand.u32 %s34, 1
        %s319 = smul.addr %s318, 8
        %s320 = scalar_lea.vmem [#allocation3], %s319
        %p321 = pneg %p47
        %p322 = pneg %p44
        %p323 = scmp.lt.s32.totalorder %s26, 1
        %s324 = scalar_select %p323, %s26, 1
        %s325 = scalar_lea.vmem %s1, %s324
        %p326 = pneg %p73
        %p327 = pneg %p70
        %p328 = pneg %p94
        %p329 = pneg %p91
        %p330 = pneg %p115
        %p331 = pneg %p112
        %p332 = pneg %p136
        %p333 = pneg %p133
        %p334 = pneg %p157
        %p335 = pneg %p154
        %p336 = pneg %p178
        %p337 = pneg %p175
        %p338 = pneg %p199
        %p339 = pneg %p196
        %p340 = pneg %p225
        %p341 = pneg %p222
        %s342 = sand.u32 %s212, 1
        %s343 = scalar_lea.sflag [#allocation5], %s342
        %s344 = sand.u32 %s212, 1
        %s345 = smul.addr %s344, 8
        %s346 = scalar_lea.vmem [#allocation8], %s345
        %p347 = scmp.lt.s32.totalorder %s26, 1
        %s348 = scalar_select %p347, %s26, 1
        %s349 = scalar_lea.vmem %s1, %s348
        %v351 = vld [vmem:[%s307] sm:$0xff]
        %vm352 = vcmask 261120
        %v353 = vsel %vm352, %v351, 0.0
        %354 = vadd.xlane.f32.xlu0 %v353
        %v355 = vpop.xlane.xlu0 %354
        %v356 = vrcp.pop 32.0
        %v357 = vmul.f32 %v355, %v356
        %v358 = vsub.f32 %v351, %v357
        %v359 = vmul.f32 %v358, %v358
        %v360 = vsel %vm352, %v359, 0.0
        %361 = vadd.xlane.f32.xlu0 %v360
        %v362 = vpop.xlane.xlu0 %361
        %v363 = vmul.f32 %v362, %v356
        %v364 = vadd.f32 %v363, 1e-08
        %v365 = vrsqrt.pop %v364
        %v366 = vmul.f32 %v358, %v365
        %v367 = vld [vmem:[%s2] sm:$0x1]
        %v369 = vlaneseq
        %v370 = vshrl.u32 %v369, 7
        %v371 = vsub.s32 0, %v370
        %v372 = vrot.slane %v367, %v371
        %v374 = vmul.f32 %v366, %v372
        %v375 = vld [vmem:[%s3] sm:$0x1]
        %v377 = vlaneseq
        %v378 = vshrl.u32 %v377, 7
        %v379 = vsub.s32 0, %v378
        %v380 = vrot.slane %v375, %v379
        %v382 = vadd.f32 %v374, %v380
        %v383 = vpack.c.bf16 %v382, %v382
        %v384 = vld [vmem:[#allocation6] sm:$0xf]
        %v385 = vld [vmem:[#allocation6 + $0x4] sm:$0xf]
        %v386 = vld [vmem:[#allocation6 + $0x8] sm:$0xf]
        %v387 = vld [vmem:[#allocation6 + $0xc] sm:$0xf]
        %v388 = vld [vmem:[%s5] sm:$0x1]
        %v390 = vlaneseq
        %v391 = vshrl.u32 %v390, 7
        %v392 = vsub.s32 0, %v391
        %v393 = vrot.slane %v388, %v392
        %v399 = vunpack.c.l.b16 %v384
        %v400 = vunpack.c.l.b16 %v385
        %v401 = vunpack.c.l.b16 %v386
        %v402 = vunpack.c.l.b16 %v387
        %v403 = vpack.c.b16 %v400, %v399
        %v404 = vpack.c.b16 %v402, %v401
        %v408 = vsel %vm352, %v383, 0
        %410 = vmatprep.subr.bf16.mxu0 0
        %411 = vmatpush1.bf16.msra.mxu0 %v403
        %412 = vmatprep.subr.bf16.mxu0 0
        %413 = vmatpush1.bf16.msra.mxu0 %v404
        %414 = vmatprep.subr.bf16.mxu0 0
        %415 = vmatpush1.bf16.msra.mxu0 0
        %416 = vmatprep.subr.bf16.mxu0 0
        %417 = vmatpush1.bf16.msra.mxu0 0
        %418 = vmatprep.subr.bf16.mxu0 0
        %419 = vmatpush1.bf16.msra.mxu0 0
        %420 = vmatprep.subr.bf16.mxu0 0
        %421 = vmatpush1.bf16.msra.mxu0 0
        %422 = vmatprep.subr.bf16.mxu0 0
        %423 = vmatpush1.bf16.msra.mxu0 0
        %424 = vmatprep.subr.bf16.mxu0 0
        %425 = vmatpush1.bf16.msra.mxu0 0
        %426 = vmatprep.subr.bf16.mxu0 0
        %427 = vmatpush1.bf16.msra.mxu0 0
        %428 = vmatprep.subr.bf16.mxu0 0
        %429 = vmatpush1.bf16.msra.mxu0 0
        %430 = vmatprep.subr.bf16.mxu0 0
        %431 = vmatpush1.bf16.msra.mxu0 0
        %432 = vmatprep.subr.bf16.mxu0 0
        %433 = vmatpush1.bf16.msra.mxu0 0
        %434 = vmatprep.subr.bf16.mxu0 0
        %435 = vmatpush1.bf16.msra.mxu0 0
        %436 = vmatprep.subr.bf16.mxu0 0
        %437 = vmatpush1.bf16.msra.mxu0 0
        %438 = vmatprep.subr.bf16.mxu0 0
        %439 = vmatpush1.bf16.msra.mxu0 0
        %440 = vmatprep.subr.bf16.mxu0 0
        %441 = vmatpush1.bf16.msra.mxu0 0
        %442 = vmatprep.mubr.bf16.mxu0 0
        %443 = vmatmul.mubr.bf16.gmra.mrb[0].mxu0 %v408
        %v444 = vpop.f32.mrb[0].mxu0
        %v445 = vadd.f32 %v393, %v444
        %v446 = vpop.f32.mrb[0].mxu0
        %v447 = vpop.f32.mrb[0].mxu0
        %v448 = vpop.f32.mrb[0].mxu0
        %449 = vdwg.mxu0
        %v450 = vmul.f32 %v445, 0.35355338
        %v451 = vpack.c.bf16 %v450, %v450
        %v452 = vpack.c.bf16 %v445, %v445
        %v453 = vld [vmem:[%s349] sm:$0x1]
        %v455 = vlaneseq
        %v456 = vshrl.u32 %v455, 7
        %v457 = vsub.s32 0, %v456
        %v458 = vrot.slane %v453, %v457
        %461 = vrot.lane.b32.xlu0 %v452, 96
        %v462 = vpop.permute.xlu0 %461
        %vm463 = vcmask 64512
        %v465 = vsel %vm463, %v451, 0
        %v468 = vsel %vm463, %v462, 0
        %470 = vmatprep.subr.bf16.mxu0 0
        %471 = vmatpush1.bf16.xpose.msra.mxu0 %v468
        %472 = vmatprep.subr.bf16.mxu0 0
        %473 = vmatpush1.bf16.xpose.msra.mxu0 0
        %474 = vmatprep.subr.bf16.mxu0 0
        %475 = vmatpush1.bf16.xpose.msra.mxu0 0
        %476 = vmatprep.subr.bf16.mxu0 0
        %477 = vmatpush1.bf16.xpose.msra.mxu0 0
        %478 = vmatprep.subr.bf16.mxu0 0
        %479 = vmatpush1.bf16.xpose.msra.mxu0 0
        %480 = vmatprep.subr.bf16.mxu0 0
        %481 = vmatpush1.bf16.xpose.msra.mxu0 0
        %482 = vmatprep.subr.bf16.mxu0 0
        %483 = vmatpush1.bf16.xpose.msra.mxu0 0
        %484 = vmatprep.subr.bf16.mxu0 0
        %485 = vmatpush1.bf16.xpose.msra.mxu0 0
        %486 = vmatprep.subr.bf16.mxu0 0
        %487 = vmatpush1.bf16.xpose.msra.mxu0 0
        %488 = vmatprep.subr.bf16.mxu0 0
        %489 = vmatpush1.bf16.xpose.msra.mxu0 0
        %490 = vmatprep.subr.bf16.mxu0 0
        %491 = vmatpush1.bf16.xpose.msra.mxu0 0
        %492 = vmatprep.subr.bf16.mxu0 0
        %493 = vmatpush1.bf16.xpose.msra.mxu0 0
        %494 = vmatprep.subr.bf16.mxu0 0
        %495 = vmatpush1.bf16.xpose.msra.mxu0 0
        %496 = vmatprep.subr.bf16.mxu0 0
        %497 = vmatpush1.bf16.xpose.msra.mxu0 0
        %498 = vmatprep.subr.bf16.mxu0 0
        %499 = vmatpush1.bf16.xpose.msra.mxu0 0
        %500 = vmatprep.subr.bf16.mxu0 0
        %501 = vmatpush1.bf16.xpose.msra.mxu0 0
        %502 = vmatprep.mubr.bf16.mxu0 0
        %503 = vmatmul.mubr.bf16.gmra.mrb[0].mxu0 %v465
        %v504 = vpop.f32.mrb[0].mxu0
        %v505 = vadd.f32 %v458, %v504
        %v506 = vpop.f32.mrb[0].mxu0
        %v507 = vpop.f32.mrb[0].mxu0
        %v508 = vpop.f32.mrb[0].mxu0
        %509 = vdwg.mxu0
        %v510 = vsel %vm463, %v505, -inf
        %511 = vmax.xlane.f32.xlu0 %v510
        %v512 = vpop.xlane.xlu0 %511
        %v513 = vsub.f32 %v505, %v512
        %v514 = vmul.f32 %v513, 1.442695
        %v515 = vpow.pop %v514
        %v516 = vsel %vm463, %v515, 0.0
        %517 = vadd.xlane.f32.xlu0 %v516
        %v518 = vpop.xlane.xlu0 %517
        %v519 = vrcp.pop %v518
        %v520 = vmul.f32 %v515, %v519
        %v521 = vpack.c.bf16 %v520, %v520
        %522 = vrot.lane.b32.xlu0 %v452, 64
        %v523 = vpop.permute.xlu0 %522
        %v525 = vsel %vm463, %v521, 0
        %vm527 = vcmask 1043456
        %v529 = vsel %vm527, %v523, 0
        %531 = vmatprep.subr.bf16.mxu0 0
        %532 = vmatpush1.bf16.msra.mxu0 %v529
        %533 = vmatprep.subr.bf16.mxu0 0
        %534 = vmatpush1.bf16.msra.mxu0 0
        %535 = vmatprep.subr.bf16.mxu0 0
        %536 = vmatpush1.bf16.msra.mxu0 0
        %537 = vmatprep.subr.bf16.mxu0 0
        %538 = vmatpush1.bf16.msra.mxu0 0
        %539 = vmatprep.subr.bf16.mxu0 0
        %540 = vmatpush1.bf16.msra.mxu0 0
        %541 = vmatprep.subr.bf16.mxu0 0
        %542 = vmatpush1.bf16.msra.mxu0 0
        %543 = vmatprep.subr.bf16.mxu0 0
        %544 = vmatpush1.bf16.msra.mxu0 0
        %545 = vmatprep.subr.bf16.mxu0 0
        %546 = vmatpush1.bf16.msra.mxu0 0
        %547 = vmatprep.subr.bf16.mxu0 0
        %548 = vmatpush1.bf16.msra.mxu0 0
        %549 = vmatprep.subr.bf16.mxu0 0
        %550 = vmatpush1.bf16.msra.mxu0 0
        %551 = vmatprep.subr.bf16.mxu0 0
        %552 = vmatpush1.bf16.msra.mxu0 0
        %553 = vmatprep.subr.bf16.mxu0 0
        %554 = vmatpush1.bf16.msra.mxu0 0
        %555 = vmatprep.subr.bf16.mxu0 0
        %556 = vmatpush1.bf16.msra.mxu0 0
        %557 = vmatprep.subr.bf16.mxu0 0
        %558 = vmatpush1.bf16.msra.mxu0 0
        %559 = vmatprep.subr.bf16.mxu0 0
        %560 = vmatpush1.bf16.msra.mxu0 0
        %561 = vmatprep.subr.bf16.mxu0 0
        %562 = vmatpush1.bf16.msra.mxu0 0
        %563 = vmatprep.mubr.bf16.mxu0 0
        %564 = vmatmul.mubr.bf16.gmra.mrb[0].mxu0 %v525
        %v565 = vpop.f32.mrb[0].mxu0
        %v566 = vadd.f32 0.0, %v565
        %v567 = vpop.f32.mrb[0].mxu0
        %v568 = vpop.f32.mrb[0].mxu0
        %v569 = vpop.f32.mrb[0].mxu0
        %570 = vdwg.mxu0
        %v571 = vpack.c.bf16 %v566, %v566
        %vm572 = vcmask 60416
        %573 = vst.msk [vmem:[#allocation2] sm:$0xf] %vm572, %v571
        %575 = vrot.lane.b32.xlu0 %v451, 120
        %v576 = vpop.permute.xlu0 %575
        %577 = vrot.lane.b32.xlu0 %v452, 88
        %v578 = vpop.permute.xlu0 %577
        %v580 = vsel %vm463, %v576, 0
        %v583 = vsel %vm463, %v578, 0
        %585 = vmatprep.subr.bf16.mxu0 0
        %586 = vmatpush1.bf16.xpose.msra.mxu0 %v583
        %587 = vmatprep.subr.bf16.mxu0 0
        %588 = vmatpush1.bf16.xpose.msra.mxu0 0
        %589 = vmatprep.subr.bf16.mxu0 0
        %590 = vmatpush1.bf16.xpose.msra.mxu0 0
        %591 = vmatprep.subr.bf16.mxu0 0
        %592 = vmatpush1.bf16.xpose.msra.mxu0 0
        %593 = vmatprep.subr.bf16.mxu0 0
        %594 = vmatpush1.bf16.xpose.msra.mxu0 0
        %595 = vmatprep.subr.bf16.mxu0 0
        %596 = vmatpush1.bf16.xpose.msra.mxu0 0
        %597 = vmatprep.subr.bf16.mxu0 0
        %598 = vmatpush1.bf16.xpose.msra.mxu0 0
        %599 = vmatprep.subr.bf16.mxu0 0
        %600 = vmatpush1.bf16.xpose.msra.mxu0 0
        %601 = vmatprep.subr.bf16.mxu0 0
        %602 = vmatpush1.bf16.xpose.msra.mxu0 0
        %603 = vmatprep.subr.bf16.mxu0 0
        %604 = vmatpush1.bf16.xpose.msra.mxu0 0
        %605 = vmatprep.subr.bf16.mxu0 0
        %606 = vmatpush1.bf16.xpose.msra.mxu0 0
        %607 = vmatprep.subr.bf16.mxu0 0
        %608 = vmatpush1.bf16.xpose.msra.mxu0 0
        %609 = vmatprep.subr.bf16.mxu0 0
        %610 = vmatpush1.bf16.xpose.msra.mxu0 0
        %611 = vmatprep.subr.bf16.mxu0 0
        %612 = vmatpush1.bf16.xpose.msra.mxu0 0
        %613 = vmatprep.subr.bf16.mxu0 0
        %614 = vmatpush1.bf16.xpose.msra.mxu0 0
        %615 = vmatprep.subr.bf16.mxu0 0
        %616 = vmatpush1.bf16.xpose.msra.mxu0 0
        %617 = vmatprep.mubr.bf16.mxu0 0
        %618 = vmatmul.mubr.bf16.gmra.mrb[0].mxu0 %v580
        %v619 = vpop.f32.mrb[0].mxu0
        %v620 = vadd.f32 %v458, %v619
        %v621 = vpop.f32.mrb[0].mxu0
        %v622 = vpop.f32.mrb[0].mxu0
        %v623 = vpop.f32.mrb[0].mxu0
        %624 = vdwg.mxu0
        %v625 = vsel %vm463, %v620, -inf
        %626 = vmax.xlane.f32.xlu0 %v625
        %v627 = vpop.xlane.xlu0 %626
        %v628 = vsub.f32 %v620, %v627
        %v629 = vmul.f32 %v628, 1.442695
        %v630 = vpow.pop %v629
        %v631 = vsel %vm463, %v630, 0.0
        %632 = vadd.xlane.f32.xlu0 %v631
        %v633 = vpop.xlane.xlu0 %632
        %v634 = vrcp.pop %v633
        %v635 = vmul.f32 %v630, %v634
        %v636 = vpack.c.bf16 %v635, %v635
        %637 = vrot.lane.b32.xlu0 %v452, 56
        %v638 = vpop.permute.xlu0 %637
        %v640 = vsel %vm463, %v636, 0
        %v643 = vsel %vm527, %v638, 0
        %645 = vmatprep.subr.bf16.mxu0 0
        %646 = vmatpush1.bf16.msra.mxu0 %v643
        %647 = vmatprep.subr.bf16.mxu0 0
        %648 = vmatpush1.bf16.msra.mxu0 0
        %649 = vmatprep.subr.bf16.mxu0 0
        %650 = vmatpush1.bf16.msra.mxu0 0
        %651 = vmatprep.subr.bf16.mxu0 0
        %652 = vmatpush1.bf16.msra.mxu0 0
        %653 = vmatprep.subr.bf16.mxu0 0
        %654 = vmatpush1.bf16.msra.mxu0 0
        %655 = vmatprep.subr.bf16.mxu0 0
        %656 = vmatpush1.bf16.msra.mxu0 0
        %657 = vmatprep.subr.bf16.mxu0 0
        %658 = vmatpush1.bf16.msra.mxu0 0
        %659 = vmatprep.subr.bf16.mxu0 0
        %660 = vmatpush1.bf16.msra.mxu0 0
        %661 = vmatprep.subr.bf16.mxu0 0
        %662 = vmatpush1.bf16.msra.mxu0 0
        %663 = vmatprep.subr.bf16.mxu0 0
        %664 = vmatpush1.bf16.msra.mxu0 0
        %665 = vmatprep.subr.bf16.mxu0 0
        %666 = vmatpush1.bf16.msra.mxu0 0
        %667 = vmatprep.subr.bf16.mxu0 0
        %668 = vmatpush1.bf16.msra.mxu0 0
        %669 = vmatprep.subr.bf16.mxu0 0
        %670 = vmatpush1.bf16.msra.mxu0 0
        %671 = vmatprep.subr.bf16.mxu0 0
        %672 = vmatpush1.bf16.msra.mxu0 0
        %673 = vmatprep.subr.bf16.mxu0 0
        %674 = vmatpush1.bf16.msra.mxu0 0
        %675 = vmatprep.subr.bf16.mxu0 0
        %676 = vmatpush1.bf16.msra.mxu0 0
        %677 = vmatprep.mubr.bf16.mxu0 0
        %678 = vmatmul.mubr.bf16.gmra.mrb[0].mxu0 %v640
        %v679 = vpop.f32.mrb[0].mxu0
        %v680 = vadd.f32 0.0, %v679
        %v681 = vpop.f32.mrb[0].mxu0
        %v682 = vpop.f32.mrb[0].mxu0
        %v683 = vpop.f32.mrb[0].mxu0
        %684 = vdwg.mxu0
        %v685 = vpack.c.bf16 %v680, %v680
        %v687 = vunpack.c.l.b16 %v685
        %v688 = vpack.c.b16 %v687, %v687
        %689 = vrot.lane.b32.xlu0 %v688, 8
        %v690 = vpop.permute.xlu0 %689
        %vm692 = vcmask 126016
        %693 = vst.msk [vmem:[#allocation2] sm:$0xf] %vm692, %v690
        %694 = vrot.lane.b32.xlu0 %v451, 112
        %v695 = vpop.permute.xlu0 %694
        %696 = vrot.lane.b32.xlu0 %v452, 80
        %v697 = vpop.permute.xlu0 %696
        %v699 = vsel %vm463, %v695, 0
        %v702 = vsel %vm463, %v697, 0
        %704 = vmatprep.subr.bf16.mxu0 0
        %705 = vmatpush1.bf16.xpose.msra.mxu0 %v702
        %706 = vmatprep.subr.bf16.mxu0 0
        %707 = vmatpush1.bf16.xpose.msra.mxu0 0
        %708 = vmatprep.subr.bf16.mxu0 0
        %709 = vmatpush1.bf16.xpose.msra.mxu0 0
        %710 = vmatprep.subr.bf16.mxu0 0
        %711 = vmatpush1.bf16.xpose.msra.mxu0 0
        %712 = vmatprep.subr.bf16.mxu0 0
        %713 = vmatpush1.bf16.xpose.msra.mxu0 0
        %714 = vmatprep.subr.bf16.mxu0 0
        %715 = vmatpush1.bf16.xpose.msra.mxu0 0
        %716 = vmatprep.subr.bf16.mxu0 0
        %717 = vmatpush1.bf16.xpose.msra.mxu0 0
        %718 = vmatprep.subr.bf16.mxu0 0
        %719 = vmatpush1.bf16.xpose.msra.mxu0 0
        %720 = vmatprep.subr.bf16.mxu0 0
        %721 = vmatpush1.bf16.xpose.msra.mxu0 0
        %722 = vmatprep.subr.bf16.mxu0 0
        %723 = vmatpush1.bf16.xpose.msra.mxu0 0
        %724 = vmatprep.subr.bf16.mxu0 0
        %725 = vmatpush1.bf16.xpose.msra.mxu0 0
        %726 = vmatprep.subr.bf16.mxu0 0
        %727 = vmatpush1.bf16.xpose.msra.mxu0 0
        %728 = vmatprep.subr.bf16.mxu0 0
        %729 = vmatpush1.bf16.xpose.msra.mxu0 0
        %730 = vmatprep.subr.bf16.mxu0 0
        %731 = vmatpush1.bf16.xpose.msra.mxu0 0
        %732 = vmatprep.subr.bf16.mxu0 0
        %733 = vmatpush1.bf16.xpose.msra.mxu0 0
        %734 = vmatprep.subr.bf16.mxu0 0
        %735 = vmatpush1.bf16.xpose.msra.mxu0 0
        %736 = vmatprep.mubr.bf16.mxu0 0
        %737 = vmatmul.mubr.bf16.gmra.mrb[0].mxu0 %v699
        %v738 = vpop.f32.mrb[0].mxu0
        %v739 = vadd.f32 %v458, %v738
        %v740 = vpop.f32.mrb[0].mxu0
        %v741 = vpop.f32.mrb[0].mxu0
        %v742 = vpop.f32.mrb[0].mxu0
        %743 = vdwg.mxu0
        %v744 = vsel %vm463, %v739, -inf
        %745 = vmax.xlane.f32.xlu0 %v744
        %v746 = vpop.xlane.xlu0 %745
        %v747 = vsub.f32 %v739, %v746
        %v748 = vmul.f32 %v747, 1.442695
        %v749 = vpow.pop %v748
        %v750 = vsel %vm463, %v749, 0.0
        %751 = vadd.xlane.f32.xlu0 %v750
        %v752 = vpop.xlane.xlu0 %751
        %v753 = vrcp.pop %v752
        %v754 = vmul.f32 %v749, %v753
        %v755 = vpack.c.bf16 %v754, %v754
        %756 = vrot.lane.b32.xlu0 %v452, 48
        %v757 = vpop.permute.xlu0 %756
        %v759 = vsel %vm463, %v755, 0
        %v762 = vsel %vm527, %v757, 0
        %764 = vmatprep.subr.bf16.mxu0 0
        %765 = vmatpush1.bf16.msra.mxu0 %v762
        %766 = vmatprep.subr.bf16.mxu0 0
        %767 = vmatpush1.bf16.msra.mxu0 0
        %768 = vmatprep.subr.bf16.mxu0 0
        %769 = vmatpush1.bf16.msra.mxu0 0
        %770 = vmatprep.subr.bf16.mxu0 0
        %771 = vmatpush1.bf16.msra.mxu0 0
        %772 = vmatprep.subr.bf16.mxu0 0
        %773 = vmatpush1.bf16.msra.mxu0 0
        %774 = vmatprep.subr.bf16.mxu0 0
        %775 = vmatpush1.bf16.msra.mxu0 0
        %776 = vmatprep.subr.bf16.mxu0 0
        %777 = vmatpush1.bf16.msra.mxu0 0
        %778 = vmatprep.subr.bf16.mxu0 0
        %779 = vmatpush1.bf16.msra.mxu0 0
        %780 = vmatprep.subr.bf16.mxu0 0
        %781 = vmatpush1.bf16.msra.mxu0 0
        %782 = vmatprep.subr.bf16.mxu0 0
        %783 = vmatpush1.bf16.msra.mxu0 0
        %784 = vmatprep.subr.bf16.mxu0 0
        %785 = vmatpush1.bf16.msra.mxu0 0
        %786 = vmatprep.subr.bf16.mxu0 0
        %787 = vmatpush1.bf16.msra.mxu0 0
        %788 = vmatprep.subr.bf16.mxu0 0
        %789 = vmatpush1.bf16.msra.mxu0 0
        %790 = vmatprep.subr.bf16.mxu0 0
        %791 = vmatpush1.bf16.msra.mxu0 0
        %792 = vmatprep.subr.bf16.mxu0 0
        %793 = vmatpush1.bf16.msra.mxu0 0
        %794 = vmatprep.subr.bf16.mxu0 0
        %795 = vmatpush1.bf16.msra.mxu0 0
        %796 = vmatprep.mubr.bf16.mxu0 0
        %797 = vmatmul.mubr.bf16.gmra.mrb[0].mxu0 %v759
        %v798 = vpop.f32.mrb[0].mxu0
        %v799 = vadd.f32 0.0, %v798
        %v800 = vpop.f32.mrb[0].mxu0
        %v801 = vpop.f32.mrb[0].mxu0
        %v802 = vpop.f32.mrb[0].mxu0
        %803 = vdwg.mxu0
        %v804 = vpack.c.bf16 %v799, %v799
        %v806 = vunpack.c.l.b16 %v804
        %v807 = vpack.c.b16 %v806, %v806
        %808 = vrot.lane.b32.xlu0 %v807, 16
        %v809 = vpop.permute.xlu0 %808
        %vm811 = vcmask 191616
        %812 = vst.msk [vmem:[#allocation2] sm:$0xf] %vm811, %v809
        %813 = vrot.lane.b32.xlu0 %v451, 104
        %v814 = vpop.permute.xlu0 %813
        %815 = vrot.lane.b32.xlu0 %v452, 72
        %v816 = vpop.permute.xlu0 %815
        %v818 = vsel %vm463, %v814, 0
        %v821 = vsel %vm463, %v816, 0
        %823 = vmatprep.subr.bf16.mxu0 0
        %824 = vmatpush1.bf16.xpose.msra.mxu0 %v821
        %825 = vmatprep.subr.bf16.mxu0 0
        %826 = vmatpush1.bf16.xpose.msra.mxu0 0
        %827 = vmatprep.subr.bf16.mxu0 0
        %828 = vmatpush1.bf16.xpose.msra.mxu0 0
        %829 = vmatprep.subr.bf16.mxu0 0
        %830 = vmatpush1.bf16.xpose.msra.mxu0 0
        %831 = vmatprep.subr.bf16.mxu0 0
        %832 = vmatpush1.bf16.xpose.msra.mxu0 0
        %833 = vmatprep.subr.bf16.mxu0 0
        %834 = vmatpush1.bf16.xpose.msra.mxu0 0
        %835 = vmatprep.subr.bf16.mxu0 0
        %836 = vmatpush1.bf16.xpose.msra.mxu0 0
        %837 = vmatprep.subr.bf16.mxu0 0
        %838 = vmatpush1.bf16.xpose.msra.mxu0 0
        %839 = vmatprep.subr.bf16.mxu0 0
        %840 = vmatpush1.bf16.xpose.msra.mxu0 0
        %841 = vmatprep.subr.bf16.mxu0 0
        %842 = vmatpush1.bf16.xpose.msra.mxu0 0
        %843 = vmatprep.subr.bf16.mxu0 0
        %844 = vmatpush1.bf16.xpose.msra.mxu0 0
        %845 = vmatprep.subr.bf16.mxu0 0
        %846 = vmatpush1.bf16.xpose.msra.mxu0 0
        %847 = vmatprep.subr.bf16.mxu0 0
        %848 = vmatpush1.bf16.xpose.msra.mxu0 0
        %849 = vmatprep.subr.bf16.mxu0 0
        %850 = vmatpush1.bf16.xpose.msra.mxu0 0
        %851 = vmatprep.subr.bf16.mxu0 0
        %852 = vmatpush1.bf16.xpose.msra.mxu0 0
        %853 = vmatprep.subr.bf16.mxu0 0
        %854 = vmatpush1.bf16.xpose.msra.mxu0 0
        %855 = vmatprep.mubr.bf16.mxu0 0
        %856 = vmatmul.mubr.bf16.gmra.mrb[0].mxu0 %v818
        %v857 = vpop.f32.mrb[0].mxu0
        %v858 = vadd.f32 %v458, %v857
        %v859 = vpop.f32.mrb[0].mxu0
        %v860 = vpop.f32.mrb[0].mxu0
        %v861 = vpop.f32.mrb[0].mxu0
        %862 = vdwg.mxu0
        %v863 = vsel %vm463, %v858, -inf
        %864 = vmax.xlane.f32.xlu0 %v863
        %v865 = vpop.xlane.xlu0 %864
        %v866 = vsub.f32 %v858, %v865
        %v867 = vmul.f32 %v866, 1.442695
        %v868 = vpow.pop %v867
        %v869 = vsel %vm463, %v868, 0.0
        %870 = vadd.xlane.f32.xlu0 %v869
        %v871 = vpop.xlane.xlu0 %870
        %v872 = vrcp.pop %v871
        %v873 = vmul.f32 %v868, %v872
        %v874 = vpack.c.bf16 %v873, %v873
        %875 = vrot.lane.b32.xlu0 %v452, 40
        %v876 = vpop.permute.xlu0 %875
        %v878 = vsel %vm463, %v874, 0
        %v881 = vsel %vm527, %v876, 0
        %883 = vmatprep.subr.bf16.mxu0 0
        %884 = vmatpush1.bf16.msra.mxu0 %v881
        %885 = vmatprep.subr.bf16.mxu0 0
        %886 = vmatpush1.bf16.msra.mxu0 0
        %887 = vmatprep.subr.bf16.mxu0 0
        %888 = vmatpush1.bf16.msra.mxu0 0
        %889 = vmatprep.subr.bf16.mxu0 0
        %890 = vmatpush1.bf16.msra.mxu0 0
        %891 = vmatprep.subr.bf16.mxu0 0
        %892 = vmatpush1.bf16.msra.mxu0 0
        %893 = vmatprep.subr.bf16.mxu0 0
        %894 = vmatpush1.bf16.msra.mxu0 0
        %895 = vmatprep.subr.bf16.mxu0 0
        %896 = vmatpush1.bf16.msra.mxu0 0
        %897 = vmatprep.subr.bf16.mxu0 0
        %898 = vmatpush1.bf16.msra.mxu0 0
        %899 = vmatprep.subr.bf16.mxu0 0
        %900 = vmatpush1.bf16.msra.mxu0 0
        %901 = vmatprep.subr.bf16.mxu0 0
        %902 = vmatpush1.bf16.msra.mxu0 0
        %903 = vmatprep.subr.bf16.mxu0 0
        %904 = vmatpush1.bf16.msra.mxu0 0
        %905 = vmatprep.subr.bf16.mxu0 0
        %906 = vmatpush1.bf16.msra.mxu0 0
        %907 = vmatprep.subr.bf16.mxu0 0
        %908 = vmatpush1.bf16.msra.mxu0 0
        %909 = vmatprep.subr.bf16.mxu0 0
        %910 = vmatpush1.bf16.msra.mxu0 0
        %911 = vmatprep.subr.bf16.mxu0 0
        %912 = vmatpush1.bf16.msra.mxu0 0
        %913 = vmatprep.subr.bf16.mxu0 0
        %914 = vmatpush1.bf16.msra.mxu0 0
        %915 = vmatprep.mubr.bf16.mxu0 0
        %916 = vmatmul.mubr.bf16.gmra.mrb[0].mxu0 %v878
        %v917 = vpop.f32.mrb[0].mxu0
        %v918 = vadd.f32 0.0, %v917
        %v919 = vpop.f32.mrb[0].mxu0
        %v920 = vpop.f32.mrb[0].mxu0
        %v921 = vpop.f32.mrb[0].mxu0
        %922 = vdwg.mxu0
        %v923 = vpack.c.bf16 %v918, %v918
        %v925 = vunpack.c.l.b16 %v923
        %v926 = vpack.c.b16 %v925, %v925
        %927 = vrot.lane.b32.xlu0 %v926, 24
        %v928 = vpop.permute.xlu0 %927
        %vm930 = vcmask 257216
        %931 = vst.msk [vmem:[#allocation2] sm:$0xf] %vm930, %v928
        %v932 = vld [vmem:[#allocation2] sm:$0xf]
        %v933 = vld [vmem:[%s6] sm:$0xf]
        %v934 = vld [vmem:[%s6 + $0x4] sm:$0xf]
        %v935 = vld [vmem:[%s6 + $0x8] sm:$0xf]
        %v936 = vld [vmem:[%s6 + $0xc] sm:$0xf]
        %v941 = vunpack.c.l.b16 %v933
        %v942 = vunpack.c.l.b16 %v934
        %v943 = vunpack.c.l.b16 %v935
        %v944 = vunpack.c.l.b16 %v936
        %v945 = vpack.c.b16 %v942, %v941
        %v946 = vpack.c.b16 %v944, %v943
        %v950 = vsel %vm352, %v932, 0
        %952 = vmatprep.subr.bf16.mxu0 0
        %953 = vmatpush1.bf16.msra.mxu0 %v945
        %954 = vmatprep.subr.bf16.mxu0 0
        %955 = vmatpush1.bf16.msra.mxu0 %v946
        %956 = vmatprep.subr.bf16.mxu0 0
        %957 = vmatpush1.bf16.msra.mxu0 0
        %958 = vmatprep.subr.bf16.mxu0 0
        %959 = vmatpush1.bf16.msra.mxu0 0
        %960 = vmatprep.subr.bf16.mxu0 0
        %961 = vmatpush1.bf16.msra.mxu0 0
        %962 = vmatprep.subr.bf16.mxu0 0
        %963 = vmatpush1.bf16.msra.mxu0 0
        %964 = vmatprep.subr.bf16.mxu0 0
        %965 = vmatpush1.bf16.msra.mxu0 0
        %966 = vmatprep.subr.bf16.mxu0 0
        %967 = vmatpush1.bf16.msra.mxu0 0
        %968 = vmatprep.subr.bf16.mxu0 0
        %969 = vmatpush1.bf16.msra.mxu0 0
        %970 = vmatprep.subr.bf16.mxu0 0
        %971 = vmatpush1.bf16.msra.mxu0 0
        %972 = vmatprep.subr.bf16.mxu0 0
        %973 = vmatpush1.bf16.msra.mxu0 0
        %974 = vmatprep.subr.bf16.mxu0 0
        %975 = vmatpush1.bf16.msra.mxu0 0
        %976 = vmatprep.subr.bf16.mxu0 0
        %977 = vmatpush1.bf16.msra.mxu0 0
        %978 = vmatprep.subr.bf16.mxu0 0
        %979 = vmatpush1.bf16.msra.mxu0 0
        %980 = vmatprep.subr.bf16.mxu0 0
        %981 = vmatpush1.bf16.msra.mxu0 0
        %982 = vmatprep.subr.bf16.mxu0 0
        %983 = vmatpush1.bf16.msra.mxu0 0
        %984 = vmatprep.mubr.bf16.mxu0 0
        %985 = vmatmul.mubr.bf16.gmra.mrb[0].mxu0 %v950
        %v986 = vpop.f32.mrb[0].mxu0
        %v987 = vadd.f32 0.0, %v986
        %v988 = vpop.f32.mrb[0].mxu0
        %v989 = vpop.f32.mrb[0].mxu0
        %v990 = vpop.f32.mrb[0].mxu0
        %991 = vdwg.mxu0
        %v992 = vadd.f32 %v351, %v987
        %v993 = vld [vmem:[%s7] sm:$0x1]
        %v995 = vlaneseq
        %v996 = vshrl.u32 %v995, 7
        %v997 = vsub.s32 0, %v996
        %v998 = vrot.slane %v993, %v997
        %v1000 = vadd.f32 %v992, %v998
        %1001 = vst.msk [vmem:[%s346] sm:$0xff] %vm352, %v1000
        %s1002 = sand.u32 %s212, 1
        %s1003 = scalar_lea.sflag [#allocation5], %s1002
        %s1004 = sand.u32 %s212, 1
        %s1005 = smul.addr %s1004, 8
        %s1006 = scalar_lea.vmem [#allocation8], %s1005
        // Predicated region
        $region61: #{tpu_custom_call.1} parent=51 // pred_check
          %p1007 = pneg %p222
        $region62: #{tpu_custom_call.1} parent=51 // pred_check_branch
          %1009 = sbr.rel (%p1007) target = $region64
        $region63: #{tpu_custom_call.1} parent=51 // pred_region
          %s1011 = ssub.s32 128, 128
          %1012 = vsyncadd %s1003, %s1011
          %s1013 = smul.addr %s26, 128
          %s1014 = scalar_lea.hbm %s8, %s1013
          %s1016 = sshll.u32 %s1006, 4
          %s1017 = int_to_ptr.vmem [resolvable:$true] %s1016
          %1019 = dma.vmem_to_hbm [thread:$0]  %s1017, 128, %s1014, %s1003
        $region64: #{tpu_custom_call.1} parent=51 // pred_fallthru
          _
      $region52: #{tpu_custom_call.1} parent=5 // pred_fallthru
        _
      %p1020 = scmp.le.s32.totalorder 2, %s21
      // Predicated region
      $region65: #{tpu_custom_call.1} parent=5 // pred_check
        %p1021 = pneg %p1020
      $region66: #{tpu_custom_call.1} parent=5 // pred_check_branch
        %1023 = sbr.rel (%p1021) target = $region68
      $region67: #{tpu_custom_call.1} parent=5 // pred_region
        %s1024 = ssub.s32 %s21, 2
        // Predicated region
        $region69: #{tpu_custom_call.1} parent=67 // pred_check
          %p1025 = pneg %p228
        $region70: #{tpu_custom_call.1} parent=67 // pred_check_branch
          %1027 = sbr.rel (%p1025) target = $region72
        $region71: #{tpu_custom_call.1} parent=67 // pred_region
          %s1028 = sand.u32 %s213, 1
          %s1029 = scalar_lea.sflag [#allocation5], %s1028
          %s1030 = sand.u32 %s213, 1
          %s1031 = smul.addr %s1030, 8
          %s1032 = scalar_lea.vmem [#allocation8], %s1031
          %1033 = dma.done %s1029, 128
        $region72: #{tpu_custom_call.1} parent=67 // pred_fallthru
          _
      $region68: #{tpu_custom_call.1} parent=5 // pred_fallthru
        _
    $region6: #{tpu_custom_call.1} parent=1 // loop_footer
      %s25 = sadd.s32 1, %s21
    $region7: #{tpu_custom_call.1} parent=1 // loop_footer_branch
      %20 = sbr.rel target = $region3
    $region8: #{tpu_custom_call.1} parent=1 // loop_exit
      _
    %1034 = vsyncpa [#allocation4], 1
    %s1035 = scalar_lea.sflag [#allocation4], 1
    %1036 = vsyncpa %s1035, 1
    %1037 = vsyncpa [#allocation7], 1
    %1038 = vsyncpa [#allocation5], 1
    %s1039 = scalar_lea.sflag [#allocation5], 1
    %1040 = vsyncpa %s1039, 1

</llo_original>
